<compile_context>
chip_gen: v5e
topology: v5e:2x2
jax: 0.10.0
libtpu: 0.0.40
codegen_flags: <defaults>
</compile_context>

<pallas_src>
import functools
import math

import jax
import jax.numpy as jnp
import numpy as np
from jax.experimental import pallas as pl
from jax.experimental.pallas import tpu as pltpu

BN_EPS = 1e-5
KSIZE = 5                     # conv1/conv2 kernel size (fixed by the module)
MXU_DTYPE = jnp.bfloat16      # matmul-operand dtype (f32 accumulation everywhere)


# ---------------------------------------------------------------------------
# In-kernel helper (traced inside the Pallas kernel body)
# ---------------------------------------------------------------------------
def _bn_rows(h, n, mask=None):
    """Training-mode BatchNorm1d (gamma=1, beta=0) on a flattened (rows, C)
    tensor: normalize each channel over the `n` valid rows.  Single-pass
    statistics; `mask` (rows, 1) of 0/1 excludes padding rows from the stats."""
    inv_n = 1.0 / float(n)
    hm = h if mask is None else h * mask
    s1 = jnp.sum(hm, axis=0, keepdims=True)          # (1, C)
    s2 = jnp.sum(hm * hm, axis=0, keepdims=True)     # (1, C)
    mean = s1 * inv_n
    var = jnp.maximum(s2 * inv_n - mean * mean, 0.0)  # clamp: cancellation safety
    return (h - mean) * jax.lax.rsqrt(var + BN_EPS)


# ---------------------------------------------------------------------------
# Pallas kernel: the whole forward pass for one (small) batch, fully in VMEM.
# ---------------------------------------------------------------------------
def cnn_kernel(p1_ref, mask1_ref, w1_ref, b1_ref, w2_ref, b2_ref, wh_ref, bh_ref,
               out_ref, hbuf_ref, *, B, L1, L1_pad, Lp_pad, L2, n_out):
    n_hid = b1_ref.shape[1]
    mxu_dtype = w2_ref.dtype

    # ---- conv1 (wrapper-built im2col -> ONE MXU matmul) -> bias -> relu -> bn1
    h = jnp.dot(p1_ref[...], w1_ref[...], preferred_element_type=jnp.float32)
    h = jnp.maximum(h + b1_ref[...], 0.0)
    h = _bn_rows(h, B * L1, mask=mask1_ref[...])      # padding rows masked out
    # dropout(p=0.0) == identity

    # ---- maxpool(k=2, s=2): one dense store to the 8-aligned scratch, then two
    # batch-collapsed stride-2 sublane loads + one vmax.
    hbuf_ref[...] = h                                 # (B*L1_pad, n_hid)
    half = (B * L1_pad) // 2
    pooled = jnp.maximum(hbuf_ref[pl.ds(0, half, 2), :],
                         hbuf_ref[pl.ds(1, half, 2), :])   # (B*Lp_pad, n_hid)

    # ---- conv2: 5 accumulating matmuls (K = n_hid each), no cross-128-lane concat
    h2 = jnp.zeros((B * L2, n_hid), jnp.float32)
    for t in range(KSIZE):                            # static, KSIZE == 5
        tap = jnp.concatenate(
            [pooled[b * Lp_pad + t:b * Lp_pad + t + L2, :] for b in range(B)],
            axis=0)                                   # (B*L2, n_hid) sublane views
        h2 = h2 + jnp.dot(tap.astype(mxu_dtype), w2_ref[t],
                          preferred_element_type=jnp.float32)
    h2 = jnp.maximum(h2 + b2_ref[...], 0.0)
    h2 = _bn_rows(h2, B * L2)

    # ---- fused prediction + attention heads (kernel_size=1 convs, one matmul).
    # K=n_hid, N=n_out+1: a single MXU pass either way -> stays f32 for parity.
    heads = jnp.dot(h2, wh_ref[...], preferred_element_type=jnp.float32) + bh_ref[...]

    # ---- per-batch softmax over length + attention-weighted mean; ONE dense store
    inv_L2 = 1.0 / float(L2)
    outs = []
    for b in range(B):                                # static, B is tiny
        hb = heads[b * L2:(b + 1) * L2, :]            # (L2, n_out + 1)
        pred_b = hb[:, :n_out]                        # (L2, n_out)
        s_b = hb[:, n_out:]                           # (L2, 1)
        s_b = s_b - jnp.max(s_b, axis=0, keepdims=True)
        e_b = jnp.exp(s_b)
        att_b = e_b * pl.reciprocal(jnp.sum(e_b, axis=0, keepdims=True),
                                    approx=True)
        outs.append(jnp.sum(pred_b * att_b, axis=0, keepdims=True) * inv_L2)
    out_ref[...] = jnp.concatenate(outs, axis=0)      # single (B, n_out) store


# ---------------------------------------------------------------------------
# Wrapper: layout plumbing (im2col, padding, masks, weight reshapes) stays in XLA.
# ---------------------------------------------------------------------------
def cnn_forward(x_ncl, params, mxu_dtype=MXU_DTYPE):
    w1, b1, w2, b2, wp, bp, wa, ba = params
    x = jnp.transpose(x_ncl, (0, 2, 1)).astype(jnp.float32)   # NCL -> NLC
    B, L, n_in = x.shape
    n_hid = w1.shape[2]
    n_out = wp.shape[1]

    L1 = L - KSIZE + 1            # conv1 'valid' output length
    L1_pad = -(-L1 // 8) * 8      # per-batch row padding -> sublane aligned scratch
    Lp = L1 // 2                  # maxpool(k=2, s=2), floor
    Lp_pad = L1_pad // 2
    L2 = Lp - KSIZE + 1           # conv2 'valid' output length
    assert L2 >= 1, "input too short for two valid k=5 convs + pool"

    # conv1 im2col hoisted out of the kernel; rows zero-padded per batch to L1_pad.
    p1 = jnp.concatenate([x[:, t:t + L1, :] for t in range(KSIZE)], axis=-1)
    p1 = jnp.pad(p1, ((0, 0), (0, L1_pad - L1), (0, 0)))
    p1 = p1.reshape(B * L1_pad, KSIZE * n_in).astype(mxu_dtype)

    # 0/1 row-validity mask: keeps the zero-padded rows out of the BN1 statistics.
    mask1 = (jnp.arange(B * L1_pad) % L1_pad < L1).astype(jnp.float32)[:, None]

    # Weight layouts prepared once outside the kernel.
    w1f = w1.reshape(KSIZE * n_in, n_hid).astype(mxu_dtype)   # rows ordered (tap, cin)
    w2t = w2.astype(mxu_dtype)                                # (KSIZE, n_hid, n_hid)
    wh = jnp.concatenate([wp, wa], axis=1)                    # (n_hid, n_out + 1)
    bh = jnp.concatenate([bp, ba], axis=1)                    # (1, n_out + 1)

    kernel = functools.partial(cnn_kernel, B=B, L1=L1, L1_pad=L1_pad,
                               Lp_pad=Lp_pad, L2=L2, n_out=n_out)

    vmem = pl.BlockSpec(memory_space=pltpu.MemorySpace.VMEM)
    return pl.pallas_call(
        kernel,
        out_shape=jax.ShapeDtypeStruct((B, n_out), jnp.float32),
        in_specs=[vmem] * 8,
        out_specs=vmem,
        scratch_shapes=[pltpu.VMEM((B * L1_pad, n_hid), jnp.float32)],
    )(p1, mask1, w1f, b1, w2t, b2, wh, bh)


def init_params(key, n_in, n_hid, n_out):
    """Deterministic synthetic init matching the module's init_weights scheme:
    conv weight ~ N(0, sqrt(2 / (kernel * out_channels))), bias = 0.1,
    BN gamma=1 / beta=0 (folded into the kernel)."""
    k1, k2, k3, k4 = jax.random.split(key, 4)
    w1 = jax.random.normal(k1, (KSIZE, n_in, n_hid), jnp.float32) * math.sqrt(2.0 / (KSIZE * n_hid))
    b1 = jnp.full((1, n_hid), 0.1, jnp.float32)
    w2 = jax.random.normal(k2, (KSIZE, n_hid, n_hid), jnp.float32) * math.sqrt(2.0 / (KSIZE * n_hid))
    b2 = jnp.full((1, n_hid), 0.1, jnp.float32)
    wp = jax.random.normal(k3, (n_hid, n_out), jnp.float32) * math.sqrt(2.0 / (1 * n_out))
    bp = jnp.full((1, n_out), 0.1, jnp.float32)
    wa = jax.random.normal(k4, (n_hid, 1), jnp.float32) * math.sqrt(2.0 / (1 * 1))
    ba = jnp.full((1, 1), 0.1, jnp.float32)
    return (w1, b1, w2, b2, wp, bp, wa, ba)


def reference_forward(x_ncl, params, mxu_dtype=MXU_DTYPE):
    """Pure-JAX reference mirroring the PyTorch forward (training mode, p=0).
    The conv matmul operands use the SAME precision policy as the kernel
    (bf16 operands, f32 accumulation): training-mode BN over only B*L2 rows
    amplifies any sub-ulp difference without bound near ReLU zero-crossings,
    so parity must be checked under a matched matmul precision policy."""
    w1, b1, w2, b2, wp, bp, wa, ba = params
    x = jnp.transpose(x_ncl, (0, 2, 1)).astype(jnp.float32)

    def conv(x, w, b):
        k = w.shape[0]
        lout = x.shape[1] - k + 1
        xq, wq = x.astype(mxu_dtype), w.astype(mxu_dtype)
        acc = sum(jnp.einsum("blc,ch->blh", xq[:, t:t + lout, :], wq[t],
                             preferred_element_type=jnp.float32)
                  for t in range(k))
        return acc + b[None]

    def bn(h):
        m = jnp.mean(h, axis=(0, 1), keepdims=True)
        v = jnp.mean((h - m) ** 2, axis=(0, 1), keepdims=True)
        return (h - m) * jax.lax.rsqrt(v + BN_EPS)

    h = bn(jax.nn.relu(conv(x, w1, b1)))
    lp = h.shape[1] // 2
    h = jnp.maximum(h[:, 0:2 * lp:2, :], h[:, 1:2 * lp:2, :])
    h = bn(jax.nn.relu(conv(h, w2, b2)))
    pred = jnp.einsum("blh,ho->blo", h, wp) + bp[None]
    att = jax.nn.softmax(jnp.einsum("blh,ho->blo", h, wa) + ba[None], axis=1)
    return jnp.mean(pred * att, axis=1)


if __name__ == "__main__":
    B, n_in, L = 2, 4, 16          # PyTorch input layout: (B, n_in, L)
    n_hid, n_out = 32, 8

    key = jax.random.PRNGKey(0)
    kx, kp = jax.random.split(key)
    x = jax.random.normal(kx, (B, n_in, L), jnp.float32)
    params = init_params(kp, n_in, n_hid, n_out)

    out = jax.block_until_ready(cnn_forward(x, params))
    ref = jax.block_until_ready(reference_forward(x, params))

    assert out.shape == (B, n_out), out.shape
    # Tolerance covers the single-pass BN variance, approx reciprocal, and
    # accumulation-order differences (matmul precision policy is matched).
    np.testing.assert_allclose(np.asarray(out), np.asarray(ref), rtol=5e-3, atol=5e-3)
    print("KERNEL_OK")
</pallas_src>

<mosaic_0001>
module attributes {stable_mosaic.version = 11 : i64} {
  func.func @cnn_kernel(%arg0: memref<32x20xbf16, #tpu.memory_space<vmem>>, %arg1: memref<32x1xf32, #tpu.memory_space<vmem>>, %arg2: memref<20x32xbf16, #tpu.memory_space<vmem>>, %arg3: memref<1x32xf32, #tpu.memory_space<vmem>>, %arg4: memref<5x32x32xbf16, #tpu.memory_space<vmem>>, %arg5: memref<1x32xf32, #tpu.memory_space<vmem>>, %arg6: memref<32x9xf32, #tpu.memory_space<vmem>>, %arg7: memref<1x9xf32, #tpu.memory_space<vmem>>, %arg8: memref<2x8xf32, #tpu.memory_space<vmem>>, %arg9: memref<32x32xf32, #tpu.memory_space<vmem>>) attributes {dimension_semantics = [], scalar_prefetch = 0 : i64, scratch_operands = 1 : i64, tpu.core_type = #tpu.core_type<tc>} {
    %c0 = arith.constant 0 : index
    %c0_0 = arith.constant 0 : index
    %0 = vector.load %arg0[%c0, %c0_0] : memref<32x20xbf16, #tpu.memory_space<vmem>>, vector<32x20xbf16>
    %c0_1 = arith.constant 0 : index
    %c0_2 = arith.constant 0 : index
    %1 = vector.load %arg2[%c0_1, %c0_2] : memref<20x32xbf16, #tpu.memory_space<vmem>>, vector<20x32xbf16>
    %cst = arith.constant dense<0.000000e+00> : vector<32x32xf32>
    %2 = tpu.matmul %0, %1, %cst {dimension_numbers = #tpu.dot_dimension_numbers<[1], [0], [0], [1], [0, 0, 1, 1], [], []>} : vector<32x20xbf16>, vector<20x32xbf16>, vector<32x32xf32> -> vector<32x32xf32>
    %c0_3 = arith.constant 0 : index
    %c0_4 = arith.constant 0 : index
    %3 = vector.load %arg3[%c0_3, %c0_4] : memref<1x32xf32, #tpu.memory_space<vmem>>, vector<1x32xf32>
    %4 = vector.broadcast %3 : vector<1x32xf32> to vector<32x32xf32>
    %5 = arith.addf %2, %4 : vector<32x32xf32>
    %cst_5 = arith.constant 0.000000e+00 : f32
    %6 = vector.broadcast %cst_5 : f32 to vector<32x32xf32>
    %7 = arith.maximumf %5, %6 : vector<32x32xf32>
    %c0_6 = arith.constant 0 : index
    %c0_7 = arith.constant 0 : index
    %8 = vector.load %arg1[%c0_6, %c0_7] : memref<32x1xf32, #tpu.memory_space<vmem>>, vector<32x1xf32>
    %9 = vector.broadcast %8 : vector<32x1xf32> to vector<32x32xf32>
    %10 = arith.mulf %7, %9 : vector<32x32xf32>
    %cst_8 = arith.constant dense<0.000000e+00> : vector<32xf32>
    %11 = vector.multi_reduction <add>, %10, %cst_8 [0] : vector<32x32xf32> to vector<32xf32>
    %12 = vector.shape_cast %11 : vector<32xf32> to vector<1x32xf32>
    %13 = arith.mulf %10, %10 : vector<32x32xf32>
    %cst_9 = arith.constant dense<0.000000e+00> : vector<32xf32>
    %14 = vector.multi_reduction <add>, %13, %cst_9 [0] : vector<32x32xf32> to vector<32xf32>
    %15 = vector.shape_cast %14 : vector<32xf32> to vector<1x32xf32>
    %cst_10 = arith.constant 0.0416666679 : f32
    %16 = vector.broadcast %cst_10 : f32 to vector<1x32xf32>
    %17 = arith.mulf %12, %16 : vector<1x32xf32>
    %cst_11 = arith.constant 0.0416666679 : f32
    %18 = vector.broadcast %cst_11 : f32 to vector<1x32xf32>
    %19 = arith.mulf %15, %18 : vector<1x32xf32>
    %20 = arith.mulf %17, %17 : vector<1x32xf32>
    %21 = arith.subf %19, %20 : vector<1x32xf32>
    %cst_12 = arith.constant 0.000000e+00 : f32
    %22 = vector.broadcast %cst_12 : f32 to vector<1x32xf32>
    %23 = arith.maximumf %21, %22 : vector<1x32xf32>
    %24 = vector.broadcast %17 : vector<1x32xf32> to vector<32x32xf32>
    %25 = arith.subf %7, %24 : vector<32x32xf32>
    %cst_13 = arith.constant 9.99999974E-6 : f32
    %26 = vector.broadcast %cst_13 : f32 to vector<1x32xf32>
    %27 = arith.addf %23, %26 : vector<1x32xf32>
    %28 = math.rsqrt %27 : vector<1x32xf32>
    %29 = vector.broadcast %28 : vector<1x32xf32> to vector<32x32xf32>
    %30 = arith.mulf %25, %29 : vector<32x32xf32>
    %c0_14 = arith.constant 0 : index
    %c0_15 = arith.constant 0 : index
    %31 = vector.load %arg9[%c0_14, %c0_15] : memref<32x32xf32, #tpu.memory_space<vmem>>, vector<32x32xf32>
    tpu.vector_store %arg9[%c0_14, %c0_15], %30 {strides = array<i32>} : memref<32x32xf32, #tpu.memory_space<vmem>>, vector<32x32xf32>,
    %c0_16 = arith.constant 0 : index
    %c0_17 = arith.constant 0 : index
    %32 = tpu.strided_load %arg9[%c0_16, %c0_17] {strides = array<i32: 2, 1>} : memref<32x32xf32, #tpu.memory_space<vmem>>, vector<16x32xf32>
    %c1 = arith.constant 1 : index
    %c0_18 = arith.constant 0 : index
    %33 = tpu.strided_load %arg9[%c1, %c0_18] {strides = array<i32: 2, 1>} : memref<32x32xf32, #tpu.memory_space<vmem>>, vector<16x32xf32>
    %34 = arith.maximumf %32, %33 : vector<16x32xf32>
    %cst_19 = arith.constant 0.000000e+00 : f32
    %35 = vector.broadcast %cst_19 : f32 to vector<4x32xf32>
    %36 = vector.extract_strided_slice %34 {offsets = [0, 0], sizes = [2, 32], strides = [1, 1]} : vector<16x32xf32> to vector<2x32xf32>
    %37 = vector.extract_strided_slice %34 {offsets = [8, 0], sizes = [2, 32], strides = [1, 1]} : vector<16x32xf32> to vector<2x32xf32>
    %38 = tpu.concatenate %36, %37 in 0 : vector<2x32xf32>, vector<2x32xf32> -> vector<4x32xf32>
    %39 = arith.truncf %38 : vector<4x32xf32> to vector<4x32xbf16>
    %c0_20 = arith.constant 0 : index
    %c0_21 = arith.constant 0 : index
    %c0_22 = arith.constant 0 : index
    %40 = vector.load %arg4[%c0_20, %c0_21, %c0_22] : memref<5x32x32xbf16, #tpu.memory_space<vmem>>, vector<1x32x32xbf16>
    %41 = vector.shape_cast %40 : vector<1x32x32xbf16> to vector<32x32xbf16>
    %cst_23 = arith.constant dense<0.000000e+00> : vector<4x32xf32>
    %42 = tpu.matmul %39, %41, %cst_23 {dimension_numbers = #tpu.dot_dimension_numbers<[1], [0], [0], [1], [0, 0, 1, 1], [], []>} : vector<4x32xbf16>, vector<32x32xbf16>, vector<4x32xf32> -> vector<4x32xf32>
    %43 = arith.addf %35, %42 : vector<4x32xf32>
    %44 = vector.extract_strided_slice %34 {offsets = [1, 0], sizes = [2, 32], strides = [1, 1]} : vector<16x32xf32> to vector<2x32xf32>
    %45 = vector.extract_strided_slice %34 {offsets = [9, 0], sizes = [2, 32], strides = [1, 1]} : vector<16x32xf32> to vector<2x32xf32>
    %46 = tpu.concatenate %44, %45 in 0 : vector<2x32xf32>, vector<2x32xf32> -> vector<4x32xf32>
    %47 = arith.truncf %46 : vector<4x32xf32> to vector<4x32xbf16>
    %c1_24 = arith.constant 1 : index
    %c0_25 = arith.constant 0 : index
    %c0_26 = arith.constant 0 : index
    %48 = vector.load %arg4[%c1_24, %c0_25, %c0_26] : memref<5x32x32xbf16, #tpu.memory_space<vmem>>, vector<1x32x32xbf16>
    %49 = vector.shape_cast %48 : vector<1x32x32xbf16> to vector<32x32xbf16>
    %cst_27 = arith.constant dense<0.000000e+00> : vector<4x32xf32>
    %50 = tpu.matmul %47, %49, %cst_27 {dimension_numbers = #tpu.dot_dimension_numbers<[1], [0], [0], [1], [0, 0, 1, 1], [], []>} : vector<4x32xbf16>, vector<32x32xbf16>, vector<4x32xf32> -> vector<4x32xf32>
    %51 = arith.addf %43, %50 : vector<4x32xf32>
    %52 = vector.extract_strided_slice %34 {offsets = [2, 0], sizes = [2, 32], strides = [1, 1]} : vector<16x32xf32> to vector<2x32xf32>
    %53 = vector.extract_strided_slice %34 {offsets = [10, 0], sizes = [2, 32], strides = [1, 1]} : vector<16x32xf32> to vector<2x32xf32>
    %54 = tpu.concatenate %52, %53 in 0 : vector<2x32xf32>, vector<2x32xf32> -> vector<4x32xf32>
    %55 = arith.truncf %54 : vector<4x32xf32> to vector<4x32xbf16>
    %c2 = arith.constant 2 : index
    %c0_28 = arith.constant 0 : index
    %c0_29 = arith.constant 0 : index
    %56 = vector.load %arg4[%c2, %c0_28, %c0_29] : memref<5x32x32xbf16, #tpu.memory_space<vmem>>, vector<1x32x32xbf16>
    %57 = vector.shape_cast %56 : vector<1x32x32xbf16> to vector<32x32xbf16>
    %cst_30 = arith.constant dense<0.000000e+00> : vector<4x32xf32>
    %58 = tpu.matmul %55, %57, %cst_30 {dimension_numbers = #tpu.dot_dimension_numbers<[1], [0], [0], [1], [0, 0, 1, 1], [], []>} : vector<4x32xbf16>, vector<32x32xbf16>, vector<4x32xf32> -> vector<4x32xf32>
    %59 = arith.addf %51, %58 : vector<4x32xf32>
    %60 = vector.extract_strided_slice %34 {offsets = [3, 0], sizes = [2, 32], strides = [1, 1]} : vector<16x32xf32> to vector<2x32xf32>
    %61 = vector.extract_strided_slice %34 {offsets = [11, 0], sizes = [2, 32], strides = [1, 1]} : vector<16x32xf32> to vector<2x32xf32>
    %62 = tpu.concatenate %60, %61 in 0 : vector<2x32xf32>, vector<2x32xf32> -> vector<4x32xf32>
    %63 = arith.truncf %62 : vector<4x32xf32> to vector<4x32xbf16>
    %c3 = arith.constant 3 : index
    %c0_31 = arith.constant 0 : index
    %c0_32 = arith.constant 0 : index
    %64 = vector.load %arg4[%c3, %c0_31, %c0_32] : memref<5x32x32xbf16, #tpu.memory_space<vmem>>, vector<1x32x32xbf16>
    %65 = vector.shape_cast %64 : vector<1x32x32xbf16> to vector<32x32xbf16>
    %cst_33 = arith.constant dense<0.000000e+00> : vector<4x32xf32>
    %66 = tpu.matmul %63, %65, %cst_33 {dimension_numbers = #tpu.dot_dimension_numbers<[1], [0], [0], [1], [0, 0, 1, 1], [], []>} : vector<4x32xbf16>, vector<32x32xbf16>, vector<4x32xf32> -> vector<4x32xf32>
    %67 = arith.addf %59, %66 : vector<4x32xf32>
    %68 = vector.extract_strided_slice %34 {offsets = [4, 0], sizes = [2, 32], strides = [1, 1]} : vector<16x32xf32> to vector<2x32xf32>
    %69 = vector.extract_strided_slice %34 {offsets = [12, 0], sizes = [2, 32], strides = [1, 1]} : vector<16x32xf32> to vector<2x32xf32>
    %70 = tpu.concatenate %68, %69 in 0 : vector<2x32xf32>, vector<2x32xf32> -> vector<4x32xf32>
    %71 = arith.truncf %70 : vector<4x32xf32> to vector<4x32xbf16>
    %c4 = arith.constant 4 : index
    %c0_34 = arith.constant 0 : index
    %c0_35 = arith.constant 0 : index
    %72 = vector.load %arg4[%c4, %c0_34, %c0_35] : memref<5x32x32xbf16, #tpu.memory_space<vmem>>, vector<1x32x32xbf16>
    %73 = vector.shape_cast %72 : vector<1x32x32xbf16> to vector<32x32xbf16>
    %cst_36 = arith.constant dense<0.000000e+00> : vector<4x32xf32>
    %74 = tpu.matmul %71, %73, %cst_36 {dimension_numbers = #tpu.dot_dimension_numbers<[1], [0], [0], [1], [0, 0, 1, 1], [], []>} : vector<4x32xbf16>, vector<32x32xbf16>, vector<4x32xf32> -> vector<4x32xf32>
    %75 = arith.addf %67, %74 : vector<4x32xf32>
    %c0_37 = arith.constant 0 : index
    %c0_38 = arith.constant 0 : index
    %76 = vector.load %arg5[%c0_37, %c0_38] : memref<1x32xf32, #tpu.memory_space<vmem>>, vector<1x32xf32>
    %77 = vector.broadcast %76 : vector<1x32xf32> to vector<4x32xf32>
    %78 = arith.addf %75, %77 : vector<4x32xf32>
    %cst_39 = arith.constant 0.000000e+00 : f32
    %79 = vector.broadcast %cst_39 : f32 to vector<4x32xf32>
    %80 = arith.maximumf %78, %79 : vector<4x32xf32>
    %cst_40 = arith.constant dense<0.000000e+00> : vector<32xf32>
    %81 = vector.multi_reduction <add>, %80, %cst_40 [0] : vector<4x32xf32> to vector<32xf32>
    %82 = vector.shape_cast %81 : vector<32xf32> to vector<1x32xf32>
    %83 = arith.mulf %80, %80 : vector<4x32xf32>
    %cst_41 = arith.constant dense<0.000000e+00> : vector<32xf32>
    %84 = vector.multi_reduction <add>, %83, %cst_41 [0] : vector<4x32xf32> to vector<32xf32>
    %85 = vector.shape_cast %84 : vector<32xf32> to vector<1x32xf32>
    %cst_42 = arith.constant 2.500000e-01 : f32
    %86 = vector.broadcast %cst_42 : f32 to vector<1x32xf32>
    %87 = arith.mulf %82, %86 : vector<1x32xf32>
    %cst_43 = arith.constant 2.500000e-01 : f32
    %88 = vector.broadcast %cst_43 : f32 to vector<1x32xf32>
    %89 = arith.mulf %85, %88 : vector<1x32xf32>
    %90 = arith.mulf %87, %87 : vector<1x32xf32>
    %91 = arith.subf %89, %90 : vector<1x32xf32>
    %cst_44 = arith.constant 0.000000e+00 : f32
    %92 = vector.broadcast %cst_44 : f32 to vector<1x32xf32>
    %93 = arith.maximumf %91, %92 : vector<1x32xf32>
    %94 = vector.broadcast %87 : vector<1x32xf32> to vector<4x32xf32>
    %95 = arith.subf %80, %94 : vector<4x32xf32>
    %cst_45 = arith.constant 9.99999974E-6 : f32
    %96 = vector.broadcast %cst_45 : f32 to vector<1x32xf32>
    %97 = arith.addf %93, %96 : vector<1x32xf32>
    %98 = math.rsqrt %97 : vector<1x32xf32>
    %99 = vector.broadcast %98 : vector<1x32xf32> to vector<4x32xf32>
    %100 = arith.mulf %95, %99 : vector<4x32xf32>
    %c0_46 = arith.constant 0 : index
    %c0_47 = arith.constant 0 : index
    %101 = vector.load %arg6[%c0_46, %c0_47] : memref<32x9xf32, #tpu.memory_space<vmem>>, vector<32x9xf32>
    %cst_48 = arith.constant dense<0.000000e+00> : vector<4x9xf32>
    %102 = tpu.matmul %100, %101, %cst_48 {dimension_numbers = #tpu.dot_dimension_numbers<[1], [0], [0], [1], [0, 0, 1, 1], [], []>} : vector<4x32xf32>, vector<32x9xf32>, vector<4x9xf32> -> vector<4x9xf32>
    %c0_49 = arith.constant 0 : index
    %c0_50 = arith.constant 0 : index
    %103 = vector.load %arg7[%c0_49, %c0_50] : memref<1x9xf32, #tpu.memory_space<vmem>>, vector<1x9xf32>
    %104 = vector.broadcast %103 : vector<1x9xf32> to vector<4x9xf32>
    %105 = arith.addf %102, %104 : vector<4x9xf32>
    %106 = vector.extract_strided_slice %105 {offsets = [0, 0], sizes = [2, 9], strides = [1, 1]} : vector<4x9xf32> to vector<2x9xf32>
    %107 = vector.extract_strided_slice %106 {offsets = [0, 0], sizes = [2, 8], strides = [1, 1]} : vector<2x9xf32> to vector<2x8xf32>
    %108 = vector.extract_strided_slice %106 {offsets = [0, 8], sizes = [2, 1], strides = [1, 1]} : vector<2x9xf32> to vector<2x1xf32>
    %cst_51 = arith.constant dense<0xFF800000> : vector<1xf32>
    %109 = vector.multi_reduction <maximumf>, %108, %cst_51 [0] : vector<2x1xf32> to vector<1xf32>
    %110 = vector.shape_cast %109 : vector<1xf32> to vector<1x1xf32>
    %111 = vector.broadcast %110 : vector<1x1xf32> to vector<2x1xf32>
    %112 = arith.subf %108, %111 : vector<2x1xf32>
    %113 = math.exp %112 : vector<2x1xf32>
    %cst_52 = arith.constant dense<0.000000e+00> : vector<1xf32>
    %114 = vector.multi_reduction <add>, %113, %cst_52 [0] : vector<2x1xf32> to vector<1xf32>
    %115 = vector.shape_cast %114 : vector<1xf32> to vector<1x1xf32>
    %116 = tpu.reciprocal %115 {approx = true} : vector<1x1xf32> -> vector<1x1xf32>
    %117 = vector.broadcast %116 : vector<1x1xf32> to vector<2x1xf32>
    %118 = arith.mulf %113, %117 : vector<2x1xf32>
    %119 = vector.broadcast %118 : vector<2x1xf32> to vector<2x8xf32>
    %120 = arith.mulf %107, %119 : vector<2x8xf32>
    %cst_53 = arith.constant dense<0.000000e+00> : vector<8xf32>
    %121 = vector.multi_reduction <add>, %120, %cst_53 [0] : vector<2x8xf32> to vector<8xf32>
    %122 = vector.shape_cast %121 : vector<8xf32> to vector<1x8xf32>
    %cst_54 = arith.constant 5.000000e-01 : f32
    %123 = vector.broadcast %cst_54 : f32 to vector<1x8xf32>
    %124 = arith.mulf %122, %123 : vector<1x8xf32>
    %125 = vector.extract_strided_slice %105 {offsets = [2, 0], sizes = [2, 9], strides = [1, 1]} : vector<4x9xf32> to vector<2x9xf32>
    %126 = vector.extract_strided_slice %125 {offsets = [0, 0], sizes = [2, 8], strides = [1, 1]} : vector<2x9xf32> to vector<2x8xf32>
    %127 = vector.extract_strided_slice %125 {offsets = [0, 8], sizes = [2, 1], strides = [1, 1]} : vector<2x9xf32> to vector<2x1xf32>
    %cst_55 = arith.constant dense<0xFF800000> : vector<1xf32>
    %128 = vector.multi_reduction <maximumf>, %127, %cst_55 [0] : vector<2x1xf32> to vector<1xf32>
    %129 = vector.shape_cast %128 : vector<1xf32> to vector<1x1xf32>
    %130 = vector.broadcast %129 : vector<1x1xf32> to vector<2x1xf32>
    %131 = arith.subf %127, %130 : vector<2x1xf32>
    %132 = math.exp %131 : vector<2x1xf32>
    %cst_56 = arith.constant dense<0.000000e+00> : vector<1xf32>
    %133 = vector.multi_reduction <add>, %132, %cst_56 [0] : vector<2x1xf32> to vector<1xf32>
    %134 = vector.shape_cast %133 : vector<1xf32> to vector<1x1xf32>
    %135 = tpu.reciprocal %134 {approx = true} : vector<1x1xf32> -> vector<1x1xf32>
    %136 = vector.broadcast %135 : vector<1x1xf32> to vector<2x1xf32>
    %137 = arith.mulf %132, %136 : vector<2x1xf32>
    %138 = vector.broadcast %137 : vector<2x1xf32> to vector<2x8xf32>
    %139 = arith.mulf %126, %138 : vector<2x8xf32>
    %cst_57 = arith.constant dense<0.000000e+00> : vector<8xf32>
    %140 = vector.multi_reduction <add>, %139, %cst_57 [0] : vector<2x8xf32> to vector<8xf32>
    %141 = vector.shape_cast %140 : vector<8xf32> to vector<1x8xf32>
    %cst_58 = arith.constant 5.000000e-01 : f32
    %142 = vector.broadcast %cst_58 : f32 to vector<1x8xf32>
    %143 = arith.mulf %141, %142 : vector<1x8xf32>
    %144 = tpu.concatenate %124, %143 in 0 : vector<1x8xf32>, vector<1x8xf32> -> vector<2x8xf32>
    %c0_59 = arith.constant 0 : index
    %c0_60 = arith.constant 0 : index
    %145 = vector.load %arg8[%c0_59, %c0_60] : memref<2x8xf32, #tpu.memory_space<vmem>>, vector<2x8xf32>
    tpu.vector_store %arg8[%c0_59, %c0_60], %144 {strides = array<i32>} : memref<2x8xf32, #tpu.memory_space<vmem>>, vector<2x8xf32>,
    return
  }
}

</mosaic_0001>

<llo_original>
// kernel: tpu_custom_call.1
$region0: #{tpu_custom_call.1}
  #allocation0 [shape = 'u32[]', space=smem, size = 0x4, offset = 0x4, fixed_abs, tag = 'smem constant byte address 0x4 - core index']
  #allocation1 [shape = 'u32[72,128]{1,0:T(1,128)}', space=vmem, size = 0x9000, scoped, tag = 'internal scratch']
  #allocation2 [shape = 'f32[32,32]{1,0:T(8,128)}', space=vmem, size = 0x4000, scoped, tag = 'scratch operand']
  %s0 = inlined_call_operand.vmem [shape: bf16[32,20], index: 0, kind: input, shape index: {}]
  %s1 = inlined_call_operand.vmem [shape: f32[32,1], index: 1, kind: input, shape index: {}]
  %s2 = inlined_call_operand.vmem [shape: bf16[20,32], index: 2, kind: input, shape index: {}]
  %s3 = inlined_call_operand.vmem [shape: f32[1,32], index: 3, kind: input, shape index: {}]
  %s4 = inlined_call_operand.hbm [shape: bf16[5,32,32], index: 4, kind: input, shape index: {}]
  %s5 = inlined_call_operand.vmem [shape: f32[1,32], index: 5, kind: input, shape index: {}]
  %s6 = inlined_call_operand.vmem [shape: f32[32,9], index: 6, kind: input, shape index: {}]
  %s7 = inlined_call_operand.vmem [shape: f32[1,9], index: 7, kind: input, shape index: {}]
  %s8 = inlined_call_operand.hbm [shape: f32[2,8], index: 8, kind: output, shape index: {}]
  %s9 = sld [smem:[#allocation0]]
  $region46: #{tpu_custom_call.1} parent=0
    _
  %s11 = ssub.s32 1, %s9
  %s12 = scalar_select 0, %s11, %s9
  $region1: #{tpu_custom_call.1} parent=0
    #allocation3 [shape = 'u8[40960]{0}', space=vmem, size = 0xa000, scoped, tag = 'input window, operand 4, single buffered']
    #allocation4 [shape = 's32[1]{0}', space=sflag, size = 0x4, scoped, tag = 'scoped memory for tpu_custom_call.1']
    #allocation5 [shape = 's32[1]{0}', space=sflag, size = 0x4, scoped, tag = 'scoped memory for tpu_custom_call.1']
    #allocation6 [shape = 'u8[1024]{0}', space=vmem, size = 0x400, scoped, tag = 'output window, operand 0, single buffered']
    %13 = vsyncpa [#allocation4], 0
    %14 = vsyncpa [#allocation5], 0
    // Predicated region
    $region2: #{tpu_custom_call.1} parent=1 // pred_check
      _
    $region3: #{tpu_custom_call.1} parent=1 // pred_check_branch
      %16 = sbr.rel (0) target = $region5
    $region4: #{tpu_custom_call.1} parent=1 // pred_region
      _
    $region5: #{tpu_custom_call.1} parent=1 // pred_fallthru
      _
    // Predicated region
    $region6: #{tpu_custom_call.1} parent=1 // pred_check
      _
    $region7: #{tpu_custom_call.1} parent=1 // pred_check_branch
      %18 = sbr.rel (0) target = $region9
    $region8: #{tpu_custom_call.1} parent=1 // pred_region
      _
    $region9: #{tpu_custom_call.1} parent=1 // pred_fallthru
      _
    // Predicated region
    $region10: #{tpu_custom_call.1} parent=1 // pred_check
      _
    $region11: #{tpu_custom_call.1} parent=1 // pred_check_branch
      %20 = sbr.rel (0) target = $region13
    $region12: #{tpu_custom_call.1} parent=1 // pred_region
      _
    $region13: #{tpu_custom_call.1} parent=1 // pred_fallthru
      _
    // Predicated region
    $region14: #{tpu_custom_call.1} parent=1 // pred_check
      _
    $region15: #{tpu_custom_call.1} parent=1 // pred_check_branch
      %22 = sbr.rel (0) target = $region17
    $region16: #{tpu_custom_call.1} parent=1 // pred_region
      _
    $region17: #{tpu_custom_call.1} parent=1 // pred_fallthru
      _
    // Predicated region
    $region18: #{tpu_custom_call.1} parent=1 // pred_check
      _
    $region19: #{tpu_custom_call.1} parent=1 // pred_check_branch
      %24 = sbr.rel (0) target = $region21
    $region20: #{tpu_custom_call.1} parent=1 // pred_region
      %26 = vsyncadd [#allocation4], 0
      %s27 = sshll.u32 %s4, 4
      %s28 = int_to_ptr.hbm [resolvable:$true] %s27
      %s29 = sshll.u32 [#allocation3], 4
      %s30 = int_to_ptr.vmem [resolvable:$true] %s29
      %35 = dma.hbm_to_vmem [thread:$0]  %s28, 1280, %s30, [#allocation4], 64, 64, 4
    $region21: #{tpu_custom_call.1} parent=1 // pred_fallthru
      _
    // Predicated region
    $region22: #{tpu_custom_call.1} parent=1 // pred_check
      _
    $region23: #{tpu_custom_call.1} parent=1 // pred_check_branch
      %37 = sbr.rel (0) target = $region25
    $region24: #{tpu_custom_call.1} parent=1 // pred_region
      _
    $region25: #{tpu_custom_call.1} parent=1 // pred_fallthru
      _
    // Predicated region
    $region26: #{tpu_custom_call.1} parent=1 // pred_check
      _
    $region27: #{tpu_custom_call.1} parent=1 // pred_check_branch
      %39 = sbr.rel (0) target = $region29
    $region28: #{tpu_custom_call.1} parent=1 // pred_region
      _
    $region29: #{tpu_custom_call.1} parent=1 // pred_fallthru
      _
    // Predicated region
    $region30: #{tpu_custom_call.1} parent=1 // pred_check
      _
    $region31: #{tpu_custom_call.1} parent=1 // pred_check_branch
      %41 = sbr.rel (0) target = $region33
    $region32: #{tpu_custom_call.1} parent=1 // pred_region
      _
    $region33: #{tpu_custom_call.1} parent=1 // pred_fallthru
      _
    // Predicated region
    $region34: #{tpu_custom_call.1} parent=1 // pred_check
      _
    $region35: #{tpu_custom_call.1} parent=1 // pred_check_branch
      %43 = sbr.rel (0) target = $region37
    $region36: #{tpu_custom_call.1} parent=1 // pred_region
      %45 = dma.done [#allocation4], 1280
    $region37: #{tpu_custom_call.1} parent=1 // pred_fallthru
      _
    %v47 = vld [vmem:[%s0] sm:$0xf]
    %v48 = vld [vmem:[%s0 + $0x4] sm:$0xf]
    %v49 = vld [vmem:[%s0 + $0x8] sm:$0xf]
    %v50 = vld [vmem:[%s0 + $0xc] sm:$0xf]
    %v51 = vld [vmem:[%s2] sm:$0xf]
    %v52 = vld [vmem:[%s2 + $0x4] sm:$0xf]
    %v53 = vld [vmem:[%s2 + $0x8] sm:$0x3]
    %v54 = vld [vmem:[%s3] sm:$0x1]
    %v56 = vperm.slane %v54, 0
    %v62 = vunpack.c.l.b16 %v47
    %v63 = vunpack.c.l.b16 %v48
    %v64 = vunpack.c.l.b16 %v49
    %v65 = vunpack.c.l.b16 %v50
    %v66 = vpack.c.b16 %v63, %v62
    %v67 = vpack.c.b16 %v65, %v64
    %v71 = vunpack.c.l.b16 %v51
    %v72 = vunpack.c.l.b16 %v52
    %v73 = vunpack.c.l.b16 %v53
    %v74 = vpack.c.b16 %v72, %v71
    %v75 = vpack.c.b16 %v73, %v73
    %vm77 = vcmask 162816
    %v79 = vsel %vm77, %v66, 0
    %v82 = vsel %vm77, %v67, 0
    %vm84 = vcmask 1041408
    %v86 = vsel %vm84, %v75, 0
    %88 = vmatpush.bf16.msra.mxu0 0
    %89 = vmatpush.bf16.msra.mxu0 0
    %90 = vmatpush.bf16.msra.mxu0 0
    %91 = vmatpush.bf16.msra.mxu0 0
    %92 = vmatpush.bf16.msra.mxu0 0
    %93 = vmatpush.bf16.msra.mxu0 0
    %94 = vmatpush.bf16.msra.mxu0 %v86
    %95 = vmatpush.bf16.msra.mxu0 %v74
    %96 = vmatmul.bf16.gmra.mxu0 %v79
    %v97 = vpop.f32.mrf.mxu0
    %v98 = vadd.f32 %v56, %v97
    %v99 = vpop.f32.mrf.mxu0
    %v100 = vadd.f32 %v56, %v99
    %101 = vmatmul.bf16.gmra.mxu0 %v82
    %v102 = vpop.f32.mrf.mxu0
    %v103 = vadd.f32 %v56, %v102
    %v104 = vpop.f32.mrf.mxu0
    %v105 = vadd.f32 %v56, %v104
    %106 = vdwg.mxu0
    %v107 = vmax.f32 %v98, 0.0
    %v108 = vmax.f32 %v100, 0.0
    %v109 = vmax.f32 %v103, 0.0
    %v110 = vmax.f32 %v105, 0.0
    %v111 = vld [vmem:[%s1] sm:$0xff]
    %v112 = vld [vmem:[%s1 + $0x8] sm:$0xff]
    %v113 = vld [vmem:[%s1 + $0x10] sm:$0xff]
    %v114 = vld [vmem:[%s1 + $0x18] sm:$0xff]
    %116 = vset.pattern.permute.xlu0 0
    %117 = vperm.xlu0 %116, %v111
    %v118 = vpop.permute.xlu0 %117
    %121 = vset.pattern.permute.xlu0 0
    %122 = vperm.xlu0 %121, %v112
    %v123 = vpop.permute.xlu0 %122
    %126 = vset.pattern.permute.xlu0 0
    %127 = vperm.xlu0 %126, %v113
    %v128 = vpop.permute.xlu0 %127
    %131 = vset.pattern.permute.xlu0 0
    %132 = vperm.xlu0 %131, %v114
    %v133 = vpop.permute.xlu0 %132
    %v135 = vmul.f32 %v107, %v118
    %v136 = vmul.f32 %v108, %v123
    %v137 = vmul.f32 %v109, %v128
    %v138 = vmul.f32 %v110, %v133
    %vm139 = vcmask 261120
    %v140 = vsel %vm139, %v135, 0.0
    %v141 = vsel %vm139, %v136, 0.0
    %v142 = vadd.f32 %v140, %v141
    %v143 = vsel %vm139, %v137, 0.0
    %v144 = vadd.f32 %v142, %v143
    %v145 = vsel %vm139, %v138, 0.0
    %v146 = vadd.f32 %v144, %v145
    %v147 = vrot.slane %v146, 4
    %v148 = vadd.f32 %v146, %v147
    %v149 = vrot.slane %v148, 2
    %v150 = vadd.f32 %v148, %v149
    %v151 = vrot.slane %v150, 1
    %v152 = vadd.f32 %v150, %v151
    %v153 = vmul.f32 %v135, %v135
    %v154 = vmul.f32 %v136, %v136
    %v155 = vmul.f32 %v137, %v137
    %v156 = vmul.f32 %v138, %v138
    %v157 = vsel %vm139, %v153, 0.0
    %v158 = vsel %vm139, %v154, 0.0
    %v159 = vadd.f32 %v157, %v158
    %v160 = vsel %vm139, %v155, 0.0
    %v161 = vadd.f32 %v159, %v160
    %v162 = vsel %vm139, %v156, 0.0
    %v163 = vadd.f32 %v161, %v162
    %v164 = vrot.slane %v163, 4
    %v165 = vadd.f32 %v163, %v164
    %v166 = vrot.slane %v165, 2
    %v167 = vadd.f32 %v165, %v166
    %v168 = vrot.slane %v167, 1
    %v169 = vadd.f32 %v167, %v168
    %v170 = vmul.f32 %v152, 0.041666668
    %v171 = vmul.f32 %v169, 0.041666668
    %v172 = vmul.f32 %v170, %v170
    %v173 = vsub.f32 %v171, %v172
    %v174 = vmax.f32 %v173, 0.0
    %v175 = vsub.f32 %v107, %v170
    %v176 = vsub.f32 %v108, %v170
    %v177 = vsub.f32 %v109, %v170
    %v178 = vsub.f32 %v110, %v170
    %v179 = vadd.f32 %v174, 1e-05
    %v180 = vrsqrt.pop %v179
    %v181 = vmul.f32 %v180, %v179
    %v182 = vmul.f32 %v181, %v180
    %v183 = vmul.f32 0.5, %v182
    %v184 = vsub.f32 1.5, %v183
    %v185 = vmul.f32 %v180, %v184
    %vm186 = vweird.f32 %v179
    %vm187 = vweird.f32 %v180
    %vm188 = vmor %vm186, %vm187
    %v189 = vsel %vm188, %v180, %v185
    %v190 = vmul.f32 %v175, %v189
    %v191 = vmul.f32 %v176, %v189
    %v192 = vmul.f32 %v177, %v189
    %v193 = vmul.f32 %v178, %v189
    %194 = vst.msk [vmem:[#allocation2] sm:$0xff] %vm139, %v190
    %195 = vst.msk [vmem:[#allocation2 + $0x8] sm:$0xff] %vm139, %v191
    %196 = vst.msk [vmem:[#allocation2 + $0x10] sm:$0xff] %vm139, %v192
    %197 = vst.msk [vmem:[#allocation2 + $0x18] sm:$0xff] %vm139, %v193
    %v198 = vld [vmem:[#allocation2] ss:$2 sm:$0xff]
    %s199 = scalar_lea.vmem [#allocation2], 16
    %v200 = vld [vmem:[%s199] ss:$2 sm:$0xff]
    %s201 = scalar_lea.vmem [#allocation2], 1
    %v202 = vld [vmem:[%s201] ss:$2 sm:$0xff]
    %s203 = scalar_lea.vmem [#allocation2], 17
    %v204 = vld [vmem:[%s203] ss:$2 sm:$0xff]
    %v205 = vmax.f32 %v198, %v202
    %v206 = vmax.f32 %v200, %v204
    %v208 = vrot.slane %v206, 6
    %v210 = vsel %vm84, %v205, %v208
    %v211 = vpack.c.bf16 %v210, %v210
    %v212 = vld [vmem:[#allocation3] sm:$0xf]
    %v213 = vld [vmem:[#allocation3 + $0x4] sm:$0xf]
    %v214 = vld [vmem:[#allocation3 + $0x8] sm:$0xf]
    %v215 = vld [vmem:[#allocation3 + $0xc] sm:$0xf]
    %v217 = vrot.slane %v205, 1
    %v219 = vrot.slane %v206, 7
    %v221 = vsel %vm84, %v217, %v219
    %v222 = vpack.c.bf16 %v221, %v221
    %s223 = scalar_lea.vmem [#allocation3], 16
    %v224 = vld [vmem:[%s223] sm:$0xf]
    %v225 = vld [vmem:[%s223 + $0x4] sm:$0xf]
    %v226 = vld [vmem:[%s223 + $0x8] sm:$0xf]
    %v227 = vld [vmem:[%s223 + $0xc] sm:$0xf]
    %v232 = vunpack.c.l.b16 %v224
    %v233 = vunpack.c.l.b16 %v225
    %v234 = vunpack.c.l.b16 %v226
    %v235 = vunpack.c.l.b16 %v227
    %v236 = vpack.c.b16 %v233, %v232
    %v237 = vpack.c.b16 %v235, %v234
    %v241 = vsel %vm139, %v222, 0
    %243 = vmatpush.bf16.msra.mxu0 0
    %244 = vmatpush.bf16.msra.mxu0 0
    %245 = vmatpush.bf16.msra.mxu0 0
    %246 = vmatpush.bf16.msra.mxu0 0
    %247 = vmatpush.bf16.msra.mxu0 0
    %248 = vmatpush.bf16.msra.mxu0 0
    %249 = vmatpush.bf16.msra.mxu0 %v237
    %250 = vmatpush.bf16.msra.mxu0 %v236
    %251 = vmatmul.bf16.gmra.mxu0 %v241
    %v252 = vpop.f32.mrf.mxu0
    %v253 = vadd.f32 0.0, %v252
    %v254 = vpop.f32.mrf.mxu0
    %255 = vdwg.mxu0
    %v260 = vunpack.c.l.b16 %v212
    %v261 = vunpack.c.l.b16 %v213
    %v262 = vunpack.c.l.b16 %v214
    %v263 = vunpack.c.l.b16 %v215
    %v264 = vpack.c.b16 %v261, %v260
    %v265 = vpack.c.b16 %v263, %v262
    %v269 = vsel %vm139, %v211, 0
    %271 = vmatpush.bf16.msra.mxu0 0
    %272 = vmatpush.bf16.msra.mxu0 0
    %273 = vmatpush.bf16.msra.mxu0 0
    %274 = vmatpush.bf16.msra.mxu0 0
    %275 = vmatpush.bf16.msra.mxu0 0
    %276 = vmatpush.bf16.msra.mxu0 0
    %277 = vmatpush.bf16.msra.mxu0 %v265
    %278 = vmatpush.bf16.msra.mxu0 %v264
    %279 = vmatmul.bf16.gmra.mxu0 %v269
    %v280 = vpop.f32.mrf.mxu0
    %v281 = vadd.f32 %v253, %v280
    %v282 = vpop.f32.mrf.mxu0
    %283 = vdwg.mxu0
    %v284 = vrot.slane %v205, 2
    %v286 = vsel %vm84, %v284, %v206
    %v287 = vpack.c.bf16 %v286, %v286
    %s288 = scalar_lea.vmem [#allocation3], 32
    %v289 = vld [vmem:[%s288] sm:$0xf]
    %v290 = vld [vmem:[%s288 + $0x4] sm:$0xf]
    %v291 = vld [vmem:[%s288 + $0x8] sm:$0xf]
    %v292 = vld [vmem:[%s288 + $0xc] sm:$0xf]
    %v297 = vunpack.c.l.b16 %v289
    %v298 = vunpack.c.l.b16 %v290
    %v299 = vunpack.c.l.b16 %v291
    %v300 = vunpack.c.l.b16 %v292
    %v301 = vpack.c.b16 %v298, %v297
    %v302 = vpack.c.b16 %v300, %v299
    %v306 = vsel %vm139, %v287, 0
    %308 = vmatpush.bf16.msra.mxu0 0
    %309 = vmatpush.bf16.msra.mxu0 0
    %310 = vmatpush.bf16.msra.mxu0 0
    %311 = vmatpush.bf16.msra.mxu0 0
    %312 = vmatpush.bf16.msra.mxu0 0
    %313 = vmatpush.bf16.msra.mxu0 0
    %314 = vmatpush.bf16.msra.mxu0 %v302
    %315 = vmatpush.bf16.msra.mxu0 %v301
    %316 = vmatmul.bf16.gmra.mxu0 %v306
    %v317 = vpop.f32.mrf.mxu0
    %v318 = vadd.f32 0.0, %v317
    %v319 = vpop.f32.mrf.mxu0
    %320 = vdwg.mxu0
    %v321 = vadd.f32 %v281, %v318
    %v322 = vrot.slane %v205, 3
    %v324 = vrot.slane %v206, 1
    %v326 = vsel %vm84, %v322, %v324
    %v327 = vpack.c.bf16 %v326, %v326
    %s328 = scalar_lea.vmem [#allocation3], 48
    %v329 = vld [vmem:[%s328] sm:$0xf]
    %v330 = vld [vmem:[%s328 + $0x4] sm:$0xf]
    %v331 = vld [vmem:[%s328 + $0x8] sm:$0xf]
    %v332 = vld [vmem:[%s328 + $0xc] sm:$0xf]
    %v337 = vunpack.c.l.b16 %v329
    %v338 = vunpack.c.l.b16 %v330
    %v339 = vunpack.c.l.b16 %v331
    %v340 = vunpack.c.l.b16 %v332
    %v341 = vpack.c.b16 %v338, %v337
    %v342 = vpack.c.b16 %v340, %v339
    %v346 = vsel %vm139, %v327, 0
    %348 = vmatpush.bf16.msra.mxu0 0
    %349 = vmatpush.bf16.msra.mxu0 0
    %350 = vmatpush.bf16.msra.mxu0 0
    %351 = vmatpush.bf16.msra.mxu0 0
    %352 = vmatpush.bf16.msra.mxu0 0
    %353 = vmatpush.bf16.msra.mxu0 0
    %354 = vmatpush.bf16.msra.mxu0 %v342
    %355 = vmatpush.bf16.msra.mxu0 %v341
    %356 = vmatmul.bf16.gmra.mxu0 %v346
    %v357 = vpop.f32.mrf.mxu0
    %v358 = vadd.f32 0.0, %v357
    %v359 = vpop.f32.mrf.mxu0
    %360 = vdwg.mxu0
    %v361 = vadd.f32 %v321, %v358
    %v362 = vrot.slane %v205, 4
    %v364 = vrot.slane %v206, 2
    %v366 = vsel %vm84, %v362, %v364
    %v367 = vpack.c.bf16 %v366, %v366
    %s368 = scalar_lea.vmem [#allocation3], 64
    %v369 = vld [vmem:[%s368] sm:$0xf]
    %v370 = vld [vmem:[%s368 + $0x4] sm:$0xf]
    %v371 = vld [vmem:[%s368 + $0x8] sm:$0xf]
    %v372 = vld [vmem:[%s368 + $0xc] sm:$0xf]
    %v377 = vunpack.c.l.b16 %v369
    %v378 = vunpack.c.l.b16 %v370
    %v379 = vunpack.c.l.b16 %v371
    %v380 = vunpack.c.l.b16 %v372
    %v381 = vpack.c.b16 %v378, %v377
    %v382 = vpack.c.b16 %v380, %v379
    %v386 = vsel %vm139, %v367, 0
    %388 = vmatpush.bf16.msra.mxu0 0
    %389 = vmatpush.bf16.msra.mxu0 0
    %390 = vmatpush.bf16.msra.mxu0 0
    %391 = vmatpush.bf16.msra.mxu0 0
    %392 = vmatpush.bf16.msra.mxu0 0
    %393 = vmatpush.bf16.msra.mxu0 0
    %394 = vmatpush.bf16.msra.mxu0 %v382
    %395 = vmatpush.bf16.msra.mxu0 %v381
    %396 = vmatmul.bf16.gmra.mxu0 %v386
    %v397 = vpop.f32.mrf.mxu0
    %v398 = vadd.f32 0.0, %v397
    %v399 = vpop.f32.mrf.mxu0
    %400 = vdwg.mxu0
    %v401 = vadd.f32 %v361, %v398
    %v402 = vld [vmem:[%s5] sm:$0x1]
    %v404 = vperm.slane %v402, 0
    %v406 = vadd.f32 %v401, %v404
    %v407 = vmax.f32 %v406, 0.0
    %vm408 = vcmask 257024
    %v409 = vsel %vm408, %v407, 0.0
    %v410 = vrot.slane %v409, 4
    %v411 = vadd.f32 %v409, %v410
    %v412 = vrot.slane %v411, 2
    %v413 = vadd.f32 %v411, %v412
    %v414 = vrot.slane %v413, 1
    %v415 = vadd.f32 %v413, %v414
    %v416 = vmul.f32 %v407, %v407
    %v417 = vsel %vm408, %v416, 0.0
    %v418 = vrot.slane %v417, 4
    %v419 = vadd.f32 %v417, %v418
    %v420 = vrot.slane %v419, 2
    %v421 = vadd.f32 %v419, %v420
    %v422 = vrot.slane %v421, 1
    %v423 = vadd.f32 %v421, %v422
    %v424 = vmul.f32 %v415, 0.25
    %v425 = vmul.f32 %v423, 0.25
    %v426 = vmul.f32 %v424, %v424
    %v427 = vsub.f32 %v425, %v426
    %v428 = vmax.f32 %v427, 0.0
    %v429 = vsub.f32 %v407, %v424
    %v430 = vadd.f32 %v428, 1e-05
    %v431 = vrsqrt.pop %v430
    %v432 = vmul.f32 %v431, %v430
    %v433 = vmul.f32 %v432, %v431
    %v434 = vmul.f32 0.5, %v433
    %v435 = vsub.f32 1.5, %v434
    %v436 = vmul.f32 %v431, %v435
    %vm437 = vweird.f32 %v430
    %vm438 = vweird.f32 %v431
    %vm439 = vmor %vm437, %vm438
    %v440 = vsel %vm439, %v431, %v436
    %v441 = vmul.f32 %v429, %v440
    %v442 = vld [vmem:[%s6] sm:$0xff]
    %v443 = vld [vmem:[%s6 + $0x8] sm:$0xff]
    %v444 = vld [vmem:[%s6 + $0x10] sm:$0xff]
    %v445 = vld [vmem:[%s6 + $0x18] sm:$0xff]
    %v446 = vld [vmem:[%s7] sm:$0x1]
    %v448 = vperm.slane %v446, 0
    %v451 = vsel %vm139, %v441, 0
    %453 = vmatpush.msra.mxu0 0.0
    %454 = vmatpush.msra.mxu0 0.0
    %455 = vmatpush.msra.mxu0 0.0
    %456 = vmatpush.msra.mxu0 0.0
    %457 = vmatpush.msra.mxu0 0.0
    %458 = vmatpush.msra.mxu0 0.0
    %459 = vmatpush.msra.mxu0 0.0
    %460 = vmatpush.msra.mxu0 0.0
    %461 = vmatpush.msra.mxu0 0.0
    %462 = vmatpush.msra.mxu0 0.0
    %463 = vmatpush.msra.mxu0 0.0
    %464 = vmatpush.msra.mxu0 0.0
    %465 = vmatpush.msra.mxu0 %v445
    %466 = vmatpush.msra.mxu0 %v444
    %467 = vmatpush.msra.mxu0 %v443
    %468 = vmatpush.msra.mxu0 %v442
    %469 = vmatmul.f32.gmra.mxu0 %v451
    %v470 = vpop.f32.mrf.mxu0
    %v471 = vadd.f32 %v448, %v470
    %472 = vdwg.mxu0
    %vm473 = vcmask 66624
    %v474 = vsel %vm473, %v471, -inf
    %v475 = vrot.slane %v474, 4
    %v476 = vmax.f32 %v474, %v475
    %v477 = vrot.slane %v476, 2
    %v478 = vmax.f32 %v476, %v477
    %v479 = vrot.slane %v478, 1
    %v480 = vmax.f32 %v478, %v479
    %v481 = vsub.f32 %v471, %v480
    %v482 = vmul.f32 %v481, 1.442695
    %v483 = vpow.pop %v482
    %v484 = vsel %vm473, %v483, 0.0
    %v485 = vrot.slane %v484, 4
    %v486 = vadd.f32 %v484, %v485
    %v487 = vrot.slane %v486, 2
    %v488 = vadd.f32 %v486, %v487
    %v489 = vrot.slane %v488, 1
    %v490 = vadd.f32 %v488, %v489
    %v491 = vrcp.pop %v490
    %v492 = vmul.f32 %v483, %v491
    %494 = vset.pattern.permute.xlu0 8
    %495 = vperm.xlu0 %494, %v492
    %v496 = vpop.permute.xlu0 %495
    %v498 = vmul.f32 %v471, %v496
    %vm499 = vcmask 58368
    %v500 = vsel %vm499, %v498, 0.0
    %v501 = vrot.slane %v500, 4
    %v502 = vadd.f32 %v500, %v501
    %v503 = vrot.slane %v502, 2
    %v504 = vadd.f32 %v502, %v503
    %v505 = vrot.slane %v504, 1
    %v506 = vadd.f32 %v504, %v505
    %v507 = vmul.f32 %v506, 0.5
    %vm508 = vcmask 68674
    %v509 = vsel %vm508, %v471, -inf
    %v510 = vrot.slane %v509, 4
    %v511 = vmax.f32 %v509, %v510
    %v512 = vrot.slane %v511, 2
    %v513 = vmax.f32 %v511, %v512
    %v514 = vrot.slane %v513, 1
    %v515 = vmax.f32 %v513, %v514
    %v516 = vsub.f32 %v471, %v515
    %v517 = vmul.f32 %v516, 1.442695
    %v518 = vpow.pop %v517
    %v520 = vrot.slane %v518, 2
    %v522 = vsel %vm473, %v520, 0.0
    %v523 = vrot.slane %v522, 4
    %v524 = vadd.f32 %v522, %v523
    %v525 = vrot.slane %v524, 2
    %v526 = vadd.f32 %v524, %v525
    %v527 = vrot.slane %v526, 1
    %v528 = vadd.f32 %v526, %v527
    %v529 = vrcp.pop %v528
    %v530 = vmul.f32 %v518, %v529
    %532 = vset.pattern.permute.xlu0 8
    %533 = vperm.xlu0 %532, %v530
    %v534 = vpop.permute.xlu0 %533
    %v536 = vmul.f32 %v471, %v534
    %v538 = vrot.slane %v536, 2
    %v540 = vsel %vm499, %v538, 0.0
    %v541 = vrot.slane %v540, 4
    %v542 = vadd.f32 %v540, %v541
    %v543 = vrot.slane %v542, 2
    %v544 = vadd.f32 %v542, %v543
    %v545 = vrot.slane %v544, 1
    %v546 = vadd.f32 %v544, %v545
    %v547 = vmul.f32 %v546, 0.5
    %vm548 = vcmask 1040384
    %v549 = vsel %vm548, %v507, %v547
    %550 = vst.msk [vmem:[#allocation6] sm:$0x3] %vm499, %v549
    // Predicated region
    $region38: #{tpu_custom_call.1} parent=1 // pred_check
      _
    $region39: #{tpu_custom_call.1} parent=1 // pred_check_branch
      %552 = sbr.rel (0) target = $region41
    $region40: #{tpu_custom_call.1} parent=1 // pred_region
      %554 = vsyncadd [#allocation5], 0
      %s556 = sshll.u32 [#allocation6], 4
      %s557 = int_to_ptr.vmem [resolvable:$true] %s556
      %s558 = sshll.u32 %s8, 4
      %s559 = int_to_ptr.hbm [resolvable:$true] %s558
      %561 = dma.vmem_to_hbm [thread:$0]  %s557, 32, %s559, [#allocation5]
    $region41: #{tpu_custom_call.1} parent=1 // pred_fallthru
      _
    // Predicated region
    $region42: #{tpu_custom_call.1} parent=1 // pred_check
      _
    $region43: #{tpu_custom_call.1} parent=1 // pred_check_branch
      %563 = sbr.rel (0) target = $region45
    $region44: #{tpu_custom_call.1} parent=1 // pred_region
      %565 = dma.done [#allocation5], 32
    $region45: #{tpu_custom_call.1} parent=1 // pred_fallthru
      _
    %566 = vsyncpa [#allocation4], 1
    %567 = vsyncpa [#allocation5], 1

</llo_original>
